<compile_context>
chip_gen: v7x
topology: tpu7x:2x2x1
jax: 0.10.0
libtpu: 0.0.40
codegen_flags: <defaults>
</compile_context>

<pallas_src>
import functools

import jax
import jax.numpy as jnp
from jax import lax
from jax.experimental import pallas as pl
from jax.experimental.pallas import tpu as pltpu


# --------------------------------------------------------------------------- #
# Pallas kernel
# --------------------------------------------------------------------------- #
def _cosface_kernel(xn_ref, w_ref, winv_ref, lab_ref, o_ref, *, s, m, tile_c):
    """Fused CosFace tile.

    xn_ref:   (tile_b, D)       bf16  pre-normalized input rows
    w_ref:    (tile_c, D)       bf16  raw (un-normalized) weight rows for this class tile
    winv_ref: (1, tile_c)       f32   per-class inverse norms (0 on padded classes)
    lab_ref:  (tile_b, 1)       i32   integer class labels
    o_ref:    (tile_b, tile_c)  f32   logits tile: s * (cosine - m * one_hot)
    """
    # cosine = x_norm @ W^T * w_inv   (bf16 operands, f32 accumulation, post-matmul norm)
    dots = lax.dot_general(
        xn_ref[...], w_ref[...],
        dimension_numbers=(((1,), (1,)), ((), ())),
        preferred_element_type=jnp.float32)                     # (tile_b, tile_c)
    cosine = dots * winv_ref[...]

    # one-hot margin built in-register from integer labels
    col0 = pl.program_id(1) * tile_c
    cols = lax.broadcasted_iota(jnp.int32, cosine.shape, 1) + col0
    onehot = (cols == lab_ref[...]).astype(cosine.dtype)        # (tile_b, tile_c)

    # output = one_hot*(cos - m) + (1-one_hot)*cos, scaled by s
    o_ref[...] = (s * (cosine - m * onehot)).astype(o_ref.dtype)


# --------------------------------------------------------------------------- #
# Wrapper
# --------------------------------------------------------------------------- #
def cosface_forward(x, weight, label, *, s=64.0, m=0.4,
                    tile_c=1024, tile_b=256, eps=1e-12):
    """x: (B, in_features), weight: (out_features, in_features),
    label: (B,) integer class ids (or (B, out_features) one-hot)."""
    B, D = x.shape
    C, Dw = weight.shape
    assert D == Dw

    if label.ndim > 1:
        # TODO(synk): the PyTorch module applies a caller-provided (possibly soft) one-hot
        # matrix directly; here only hard labels are supported (recovered via argmax).
        label = jnp.argmax(label, axis=-1)
    label = label.astype(jnp.int32).reshape(B, 1)

    # ---- hoisted preprocessing (done once, not per class tile) --------------
    x32 = x.astype(jnp.float32)
    x_norm = jnp.sqrt(jnp.sum(x32 * x32, axis=1, keepdims=True))
    xn = (x32 / jnp.maximum(x_norm, eps)).astype(jnp.bfloat16)          # (B, D) bf16

    w32 = weight.astype(jnp.float32)
    w_norm = jnp.sqrt(jnp.sum(w32 * w32, axis=1))                        # (C,)
    w_inv = (1.0 / jnp.maximum(w_norm, eps)).reshape(1, C)               # (1, C) f32
    w_bf16 = weight.astype(jnp.bfloat16)                                 # (C, D) bf16, streamed

    # ---- tile sizing ---------------------------------------------------------
    c_round128 = ((C + 127) // 128) * 128
    tile_c_eff = max(128, min((tile_c // 128) * 128, c_round128))
    Cp = ((C + tile_c_eff - 1) // tile_c_eff) * tile_c_eff

    if B <= tile_b:
        tile_b_eff, Bp = B, B
    else:
        tile_b_eff = max(8, (tile_b // 8) * 8)
        Bp = ((B + tile_b_eff - 1) // tile_b_eff) * tile_b_eff

    # ---- padding (padded classes get w_inv = 0 -> cosine exactly 0) ---------
    if Cp != C:
        w_bf16 = jnp.pad(w_bf16, ((0, Cp - C), (0, 0)))
        w_inv = jnp.pad(w_inv, ((0, 0), (0, Cp - C)))
    if Bp != B:
        xn = jnp.pad(xn, ((0, Bp - B), (0, 0)))
        label = jnp.pad(label, ((0, Bp - B), (0, 0)), constant_values=-1)

    # ---- VMEM footprint; only raise the scoped limit when actually needed ---
    vmem_bytes = (2 * tile_c_eff * D * 2            # double-buffered bf16 weight tile
                  + 2 * tile_b_eff * tile_c_eff * 4  # double-buffered f32 output tile
                  + 2 * tile_b_eff * D * 2           # xn tile
                  + 2 * tile_c_eff * 4               # w_inv tile
                  + 2 * tile_b_eff * 4)              # label tile
    cp_kwargs = dict(dimension_semantics=("parallel", "parallel"))
    if vmem_bytes + (4 << 20) > (16 << 20):          # above v5e's default scoped limit
        cp_kwargs["vmem_limit_bytes"] = min(vmem_bytes + (4 << 20), 56 << 20)

    kernel = functools.partial(_cosface_kernel, s=float(s), m=float(m),
                               tile_c=tile_c_eff)
    out = pl.pallas_call(
        kernel,
        out_shape=jax.ShapeDtypeStruct((Bp, Cp), jnp.float32),
        grid=(Bp // tile_b_eff, Cp // tile_c_eff),
        in_specs=[
            pl.BlockSpec((tile_b_eff, D), lambda b, c: (b, 0)),        # xn
            pl.BlockSpec((tile_c_eff, D), lambda b, c: (c, 0)),        # weight tile (C,D) layout
            pl.BlockSpec((1, tile_c_eff), lambda b, c: (0, c)),        # per-class inv norms
            pl.BlockSpec((tile_b_eff, 1), lambda b, c: (b, 0)),        # labels
        ],
        out_specs=pl.BlockSpec((tile_b_eff, tile_c_eff), lambda b, c: (b, c)),
        compiler_params=pltpu.CompilerParams(**cp_kwargs),
    )(xn, w_bf16, w_inv, label)

    if Bp != B or Cp != C:
        out = out[:B, :C]
    return out


# --------------------------------------------------------------------------- #
# Pure-JAX reference (correctness check only)
# --------------------------------------------------------------------------- #
def cosface_ref(x, weight, label, *, s=64.0, m=0.4, eps=1e-12):
    xn = x / jnp.maximum(jnp.linalg.norm(x, axis=1, keepdims=True), eps)
    wn = weight / jnp.maximum(jnp.linalg.norm(weight, axis=1, keepdims=True), eps)
    cosine = jnp.dot(xn, wn.T, precision=jax.lax.Precision.HIGHEST)
    onehot = jax.nn.one_hot(label, weight.shape[0], dtype=cosine.dtype)
    return s * (cosine - m * onehot)


# --------------------------------------------------------------------------- #
if __name__ == "__main__":
    key = jax.random.PRNGKey(0)
    kx, kw, kl = jax.random.split(key, 3)

    B, in_features, out_features = 8, 128, 512
    x = jax.random.normal(kx, (B, in_features), jnp.float32)
    # xavier_uniform_ init of the class weight matrix
    bound = (6.0 / (in_features + out_features)) ** 0.5
    weight = jax.random.uniform(kw, (out_features, in_features), jnp.float32,
                                -bound, bound)
    label = jax.random.randint(kl, (B,), 0, out_features, jnp.int32)

    out = jax.block_until_ready(cosface_forward(x, weight, label, s=64.0, m=0.4))
    assert out.shape == (B, out_features) and out.dtype == jnp.float32
    assert bool(jnp.all(jnp.isfinite(out)))

    ref = jax.block_until_ready(cosface_ref(x, weight, label, s=64.0, m=0.4))
    rel_err = float(jnp.max(jnp.abs(out - ref)) / (jnp.max(jnp.abs(ref)) + 1e-6))
    assert rel_err < 5e-2, f"mismatch vs reference: rel_err={rel_err}"

    print("KERNEL_OK")
</pallas_src>

<mosaic_0001>
module attributes {stable_mosaic.version = 11 : i64} {
  func.func @_cosface_kernel(%arg0: i32, %arg1: i32, %arg2: memref<8x128xbf16, #tpu.memory_space<vmem>>, %arg3: memref<512x128xbf16, #tpu.memory_space<vmem>>, %arg4: memref<1x512xf32, #tpu.memory_space<vmem>>, %arg5: memref<8x1xi32, #tpu.memory_space<vmem>>, %arg6: memref<8x512xf32, #tpu.memory_space<vmem>>) attributes {dimension_semantics = [#tpu.dimension_semantics<parallel>, #tpu.dimension_semantics<parallel>], iteration_bounds = array<i64: 1, 1>, scalar_prefetch = 0 : i64, scratch_operands = 0 : i64, tpu.core_type = #tpu.core_type<tc>, window_params = [{transform_indices = @transform_0, window_bounds = array<i64: 8, 128>}, {transform_indices = @transform_1, window_bounds = array<i64: 512, 128>}, {transform_indices = @transform_2, window_bounds = array<i64: 1, 512>}, {transform_indices = @transform_3, window_bounds = array<i64: 8, 1>}, {transform_indices = @transform_4, window_bounds = array<i64: 8, 512>}]} {
    %c0 = arith.constant 0 : index
    %c0_0 = arith.constant 0 : index
    %0 = vector.load %arg2[%c0, %c0_0] : memref<8x128xbf16, #tpu.memory_space<vmem>>, vector<8x128xbf16>
    %c0_1 = arith.constant 0 : index
    %c0_2 = arith.constant 0 : index
    %1 = vector.load %arg3[%c0_1, %c0_2] : memref<512x128xbf16, #tpu.memory_space<vmem>>, vector<512x128xbf16>
    %cst = arith.constant dense<0.000000e+00> : vector<8x512xf32>
    %2 = tpu.matmul %0, %1, %cst {dimension_numbers = #tpu.dot_dimension_numbers<[1], [1], [0], [0], [0, 0, 1, 0], [], []>} : vector<8x128xbf16>, vector<512x128xbf16>, vector<8x512xf32> -> vector<8x512xf32>
    %c0_3 = arith.constant 0 : index
    %c0_4 = arith.constant 0 : index
    %3 = vector.load %arg4[%c0_3, %c0_4] : memref<1x512xf32, #tpu.memory_space<vmem>>, vector<1x512xf32>
    %4 = vector.broadcast %3 : vector<1x512xf32> to vector<8x512xf32>
    %5 = arith.mulf %2, %4 : vector<8x512xf32>
    %c512_i32 = arith.constant 512 : i32
    %6 = arith.muli %arg1, %c512_i32 : i32
    %7 = tpu.iota {dimensions = array<i32: 1>} : vector<8x512xi32>
    %8 = vector.broadcast %6 : i32 to vector<8x512xi32>
    %9 = arith.addi %7, %8 : vector<8x512xi32>
    %c0_5 = arith.constant 0 : index
    %c0_6 = arith.constant 0 : index
    %10 = vector.load %arg5[%c0_5, %c0_6] : memref<8x1xi32, #tpu.memory_space<vmem>>, vector<8x1xi32>
    %11 = vector.broadcast %10 : vector<8x1xi32> to vector<8x512xi32>
    %12 = arith.cmpi eq, %9, %11 : vector<8x512xi32>
    %13 = arith.extui %12 : vector<8x512xi1> to vector<8x512xi32>
    %14 = arith.sitofp %13 : vector<8x512xi32> to vector<8x512xf32>
    %cst_7 = arith.constant 4.000000e-01 : f32
    %15 = vector.broadcast %cst_7 : f32 to vector<8x512xf32>
    %16 = arith.mulf %15, %14 : vector<8x512xf32>
    %17 = arith.subf %5, %16 : vector<8x512xf32>
    %cst_8 = arith.constant 6.400000e+01 : f32
    %18 = vector.broadcast %cst_8 : f32 to vector<8x512xf32>
    %19 = arith.mulf %18, %17 : vector<8x512xf32>
    %c0_9 = arith.constant 0 : index
    %c0_10 = arith.constant 0 : index
    %20 = vector.load %arg6[%c0_9, %c0_10] : memref<8x512xf32, #tpu.memory_space<vmem>>, vector<8x512xf32>
    tpu.vector_store %arg6[%c0_9, %c0_10], %19 {strides = array<i32>} : memref<8x512xf32, #tpu.memory_space<vmem>>, vector<8x512xf32>,
    return
  }
  func.func @transform_0(%arg0: i32, %arg1: i32) -> (i32, i32) {
    %c0_i32 = arith.constant 0 : i32
    %c0_i32_0 = arith.constant 0 : i32
    return %arg0, %c0_i32 : i32, i32
  }
  func.func @transform_1(%arg0: i32, %arg1: i32) -> (i32, i32) {
    %c0_i32 = arith.constant 0 : i32
    %c0_i32_0 = arith.constant 0 : i32
    return %arg1, %c0_i32 : i32, i32
  }
  func.func @transform_2(%arg0: i32, %arg1: i32) -> (i32, i32) {
    %c0_i32 = arith.constant 0 : i32
    %c0_i32_0 = arith.constant 0 : i32
    return %c0_i32, %arg1 : i32, i32
  }
  func.func @transform_3(%arg0: i32, %arg1: i32) -> (i32, i32) {
    %c0_i32 = arith.constant 0 : i32
    %c0_i32_0 = arith.constant 0 : i32
    return %arg0, %c0_i32 : i32, i32
  }
  func.func @transform_4(%arg0: i32, %arg1: i32) -> (i32, i32) {
    %c0_i32 = arith.constant 0 : i32
    return %arg0, %arg1 : i32, i32
  }
}

</mosaic_0001>

<llo_original>
// kernel: tpu_custom_call.1
$region0: #{tpu_custom_call.1}
  #allocation0 [shape = 'u32[]', space=smem, size = 0x4, offset = 0x4, fixed_abs, tag = 'smem constant byte address 0x4 - core index']
  #allocation1 [shape = 'u32[144,128]{1,0:T(1,128)}', space=vmem, size = 0x12000, scoped, tag = 'internal scratch']
  %s0 = inlined_call_operand.vmem [shape: bf16[8,128], index: 0, kind: input, shape index: {}]
  %s1 = inlined_call_operand.hbm [shape: bf16[512,128], index: 1, kind: input, shape index: {}]
  %s2 = inlined_call_operand.vmem [shape: f32[1,512], index: 2, kind: input, shape index: {}]
  %s3 = inlined_call_operand.vmem [shape: s32[8,1], index: 3, kind: input, shape index: {}]
  %s4 = inlined_call_operand.hbm [shape: f32[8,512], index: 4, kind: output, shape index: {}]
  %s5 = sld [smem:[#allocation0]]
  $region30: #{tpu_custom_call.1} parent=0
    _
  %s7 = ssub.s32 1, %s5
  %s8 = scalar_select 0, %s7, %s5
  $region1: #{tpu_custom_call.1} parent=0
    #allocation2 [shape = 'u8[131072]{0}', space=vmem, size = 0x20000, scoped, tag = 'input window, operand 1, single buffered']
    #allocation3 [shape = 's32[1]{0}', space=sflag, size = 0x4, scoped, tag = 'scoped memory for tpu_custom_call.1']
    #allocation4 [shape = 's32[1]{0}', space=sflag, size = 0x4, scoped, tag = 'scoped memory for tpu_custom_call.1']
    #allocation5 [shape = 'u8[16384]{0}', space=vmem, size = 0x4000, scoped, tag = 'output window, operand 0, single buffered']
    %9 = vsyncpa [#allocation3], 0
    %10 = vsyncpa [#allocation4], 0
    // Predicated region
    $region2: #{tpu_custom_call.1} parent=1 // pred_check
      _
    $region3: #{tpu_custom_call.1} parent=1 // pred_check_branch
      %12 = sbr.rel (0) target = $region5
    $region4: #{tpu_custom_call.1} parent=1 // pred_region
      _
    $region5: #{tpu_custom_call.1} parent=1 // pred_fallthru
      _
    // Predicated region
    $region6: #{tpu_custom_call.1} parent=1 // pred_check
      _
    $region7: #{tpu_custom_call.1} parent=1 // pred_check_branch
      %14 = sbr.rel (0) target = $region9
    $region8: #{tpu_custom_call.1} parent=1 // pred_region
      %s16 = ssub.s32 4096, 4096
      %17 = vsyncadd [#allocation3], %s16
      %s18 = sshll.u32 [#allocation2], 4
      %s19 = int_to_ptr.vmem [resolvable:$true] %s18
      %24 = dma.hbm_to_vmem [thread:$0]  %s1, 4096, %s19, [#allocation3], 64, 64, 4
    $region9: #{tpu_custom_call.1} parent=1 // pred_fallthru
      _
    // Predicated region
    $region10: #{tpu_custom_call.1} parent=1 // pred_check
      _
    $region11: #{tpu_custom_call.1} parent=1 // pred_check_branch
      %26 = sbr.rel (0) target = $region13
    $region12: #{tpu_custom_call.1} parent=1 // pred_region
      _
    $region13: #{tpu_custom_call.1} parent=1 // pred_fallthru
      _
    // Predicated region
    $region14: #{tpu_custom_call.1} parent=1 // pred_check
      _
    $region15: #{tpu_custom_call.1} parent=1 // pred_check_branch
      %28 = sbr.rel (0) target = $region17
    $region16: #{tpu_custom_call.1} parent=1 // pred_region
      _
    $region17: #{tpu_custom_call.1} parent=1 // pred_fallthru
      _
    // Predicated region
    $region18: #{tpu_custom_call.1} parent=1 // pred_check
      _
    $region19: #{tpu_custom_call.1} parent=1 // pred_check_branch
      %30 = sbr.rel (0) target = $region21
    $region20: #{tpu_custom_call.1} parent=1 // pred_region
      %31 = dma.done [#allocation3], 4096
    $region21: #{tpu_custom_call.1} parent=1 // pred_fallthru
      _
    %v33 = vld [vmem:[%s0] sm:$0xf]
    %v34 = vld [vmem:[#allocation2] sm:$0xf]
    %v35 = vld [vmem:[#allocation2 + $0x4] sm:$0xf]
    %v36 = vld [vmem:[#allocation2 + $0x8] sm:$0xf]
    %v37 = vld [vmem:[#allocation2 + $0xc] sm:$0xf]
    %v38 = vld [vmem:[#allocation2 + $0x10] sm:$0xf]
    %v39 = vld [vmem:[#allocation2 + $0x14] sm:$0xf]
    %v40 = vld [vmem:[#allocation2 + $0x18] sm:$0xf]
    %v41 = vld [vmem:[#allocation2 + $0x1c] sm:$0xf]
    %v42 = vld [vmem:[#allocation2 + $0x20] sm:$0xf]
    %v43 = vld [vmem:[#allocation2 + $0x24] sm:$0xf]
    %v44 = vld [vmem:[#allocation2 + $0x28] sm:$0xf]
    %v45 = vld [vmem:[#allocation2 + $0x2c] sm:$0xf]
    %v46 = vld [vmem:[#allocation2 + $0x30] sm:$0xf]
    %v47 = vld [vmem:[#allocation2 + $0x34] sm:$0xf]
    %v48 = vld [vmem:[#allocation2 + $0x38] sm:$0xf]
    %v49 = vld [vmem:[#allocation2 + $0x3c] sm:$0xf]
    %v50 = vld [vmem:[#allocation2 + $0x40] sm:$0xf]
    %v51 = vld [vmem:[#allocation2 + $0x44] sm:$0xf]
    %v52 = vld [vmem:[#allocation2 + $0x48] sm:$0xf]
    %v53 = vld [vmem:[#allocation2 + $0x4c] sm:$0xf]
    %v54 = vld [vmem:[#allocation2 + $0x50] sm:$0xf]
    %v55 = vld [vmem:[#allocation2 + $0x54] sm:$0xf]
    %v56 = vld [vmem:[#allocation2 + $0x58] sm:$0xf]
    %v57 = vld [vmem:[#allocation2 + $0x5c] sm:$0xf]
    %v58 = vld [vmem:[#allocation2 + $0x60] sm:$0xf]
    %v59 = vld [vmem:[#allocation2 + $0x64] sm:$0xf]
    %v60 = vld [vmem:[#allocation2 + $0x68] sm:$0xf]
    %v61 = vld [vmem:[#allocation2 + $0x6c] sm:$0xf]
    %v62 = vld [vmem:[#allocation2 + $0x70] sm:$0xf]
    %v63 = vld [vmem:[#allocation2 + $0x74] sm:$0xf]
    %v64 = vld [vmem:[#allocation2 + $0x78] sm:$0xf]
    %v65 = vld [vmem:[#allocation2 + $0x7c] sm:$0xf]
    %v66 = vld [vmem:[#allocation2 + $0x80] sm:$0xf]
    %v67 = vld [vmem:[#allocation2 + $0x84] sm:$0xf]
    %v68 = vld [vmem:[#allocation2 + $0x88] sm:$0xf]
    %v69 = vld [vmem:[#allocation2 + $0x8c] sm:$0xf]
    %v70 = vld [vmem:[#allocation2 + $0x90] sm:$0xf]
    %v71 = vld [vmem:[#allocation2 + $0x94] sm:$0xf]
    %v72 = vld [vmem:[#allocation2 + $0x98] sm:$0xf]
    %v73 = vld [vmem:[#allocation2 + $0x9c] sm:$0xf]
    %v74 = vld [vmem:[#allocation2 + $0xa0] sm:$0xf]
    %v75 = vld [vmem:[#allocation2 + $0xa4] sm:$0xf]
    %v76 = vld [vmem:[#allocation2 + $0xa8] sm:$0xf]
    %v77 = vld [vmem:[#allocation2 + $0xac] sm:$0xf]
    %v78 = vld [vmem:[#allocation2 + $0xb0] sm:$0xf]
    %v79 = vld [vmem:[#allocation2 + $0xb4] sm:$0xf]
    %v80 = vld [vmem:[#allocation2 + $0xb8] sm:$0xf]
    %v81 = vld [vmem:[#allocation2 + $0xbc] sm:$0xf]
    %v82 = vld [vmem:[#allocation2 + $0xc0] sm:$0xf]
    %v83 = vld [vmem:[#allocation2 + $0xc4] sm:$0xf]
    %v84 = vld [vmem:[#allocation2 + $0xc8] sm:$0xf]
    %v85 = vld [vmem:[#allocation2 + $0xcc] sm:$0xf]
    %v86 = vld [vmem:[#allocation2 + $0xd0] sm:$0xf]
    %v87 = vld [vmem:[#allocation2 + $0xd4] sm:$0xf]
    %v88 = vld [vmem:[#allocation2 + $0xd8] sm:$0xf]
    %v89 = vld [vmem:[#allocation2 + $0xdc] sm:$0xf]
    %v90 = vld [vmem:[#allocation2 + $0xe0] sm:$0xf]
    %v91 = vld [vmem:[#allocation2 + $0xe4] sm:$0xf]
    %v92 = vld [vmem:[#allocation2 + $0xe8] sm:$0xf]
    %v93 = vld [vmem:[#allocation2 + $0xec] sm:$0xf]
    %v94 = vld [vmem:[#allocation2 + $0xf0] sm:$0xf]
    %v95 = vld [vmem:[#allocation2 + $0xf4] sm:$0xf]
    %v96 = vld [vmem:[#allocation2 + $0xf8] sm:$0xf]
    %v97 = vld [vmem:[#allocation2 + $0xfc] sm:$0xf]
    %v162 = vunpack.c.l.b16 %v34
    %v163 = vunpack.c.l.b16 %v35
    %v164 = vunpack.c.l.b16 %v36
    %v165 = vunpack.c.l.b16 %v37
    %v166 = vunpack.c.l.b16 %v38
    %v167 = vunpack.c.l.b16 %v39
    %v168 = vunpack.c.l.b16 %v40
    %v169 = vunpack.c.l.b16 %v41
    %v170 = vunpack.c.l.b16 %v42
    %v171 = vunpack.c.l.b16 %v43
    %v172 = vunpack.c.l.b16 %v44
    %v173 = vunpack.c.l.b16 %v45
    %v174 = vunpack.c.l.b16 %v46
    %v175 = vunpack.c.l.b16 %v47
    %v176 = vunpack.c.l.b16 %v48
    %v177 = vunpack.c.l.b16 %v49
    %v178 = vunpack.c.l.b16 %v50
    %v179 = vunpack.c.l.b16 %v51
    %v180 = vunpack.c.l.b16 %v52
    %v181 = vunpack.c.l.b16 %v53
    %v182 = vunpack.c.l.b16 %v54
    %v183 = vunpack.c.l.b16 %v55
    %v184 = vunpack.c.l.b16 %v56
    %v185 = vunpack.c.l.b16 %v57
    %v186 = vunpack.c.l.b16 %v58
    %v187 = vunpack.c.l.b16 %v59
    %v188 = vunpack.c.l.b16 %v60
    %v189 = vunpack.c.l.b16 %v61
    %v190 = vunpack.c.l.b16 %v62
    %v191 = vunpack.c.l.b16 %v63
    %v192 = vunpack.c.l.b16 %v64
    %v193 = vunpack.c.l.b16 %v65
    %v194 = vunpack.c.l.b16 %v66
    %v195 = vunpack.c.l.b16 %v67
    %v196 = vunpack.c.l.b16 %v68
    %v197 = vunpack.c.l.b16 %v69
    %v198 = vunpack.c.l.b16 %v70
    %v199 = vunpack.c.l.b16 %v71
    %v200 = vunpack.c.l.b16 %v72
    %v201 = vunpack.c.l.b16 %v73
    %v202 = vunpack.c.l.b16 %v74
    %v203 = vunpack.c.l.b16 %v75
    %v204 = vunpack.c.l.b16 %v76
    %v205 = vunpack.c.l.b16 %v77
    %v206 = vunpack.c.l.b16 %v78
    %v207 = vunpack.c.l.b16 %v79
    %v208 = vunpack.c.l.b16 %v80
    %v209 = vunpack.c.l.b16 %v81
    %v210 = vunpack.c.l.b16 %v82
    %v211 = vunpack.c.l.b16 %v83
    %v212 = vunpack.c.l.b16 %v84
    %v213 = vunpack.c.l.b16 %v85
    %v214 = vunpack.c.l.b16 %v86
    %v215 = vunpack.c.l.b16 %v87
    %v216 = vunpack.c.l.b16 %v88
    %v217 = vunpack.c.l.b16 %v89
    %v218 = vunpack.c.l.b16 %v90
    %v219 = vunpack.c.l.b16 %v91
    %v220 = vunpack.c.l.b16 %v92
    %v221 = vunpack.c.l.b16 %v93
    %v222 = vunpack.c.l.b16 %v94
    %v223 = vunpack.c.l.b16 %v95
    %v224 = vunpack.c.l.b16 %v96
    %v225 = vunpack.c.l.b16 %v97
    %v226 = vpack.c.b16 %v163, %v162
    %v227 = vpack.c.b16 %v165, %v164
    %v228 = vpack.c.b16 %v167, %v166
    %v229 = vpack.c.b16 %v169, %v168
    %v230 = vpack.c.b16 %v171, %v170
    %v231 = vpack.c.b16 %v173, %v172
    %v232 = vpack.c.b16 %v175, %v174
    %v233 = vpack.c.b16 %v177, %v176
    %v234 = vpack.c.b16 %v179, %v178
    %v235 = vpack.c.b16 %v181, %v180
    %v236 = vpack.c.b16 %v183, %v182
    %v237 = vpack.c.b16 %v185, %v184
    %v238 = vpack.c.b16 %v187, %v186
    %v239 = vpack.c.b16 %v189, %v188
    %v240 = vpack.c.b16 %v191, %v190
    %v241 = vpack.c.b16 %v193, %v192
    %v242 = vpack.c.b16 %v195, %v194
    %v243 = vpack.c.b16 %v197, %v196
    %v244 = vpack.c.b16 %v199, %v198
    %v245 = vpack.c.b16 %v201, %v200
    %v246 = vpack.c.b16 %v203, %v202
    %v247 = vpack.c.b16 %v205, %v204
    %v248 = vpack.c.b16 %v207, %v206
    %v249 = vpack.c.b16 %v209, %v208
    %v250 = vpack.c.b16 %v211, %v210
    %v251 = vpack.c.b16 %v213, %v212
    %v252 = vpack.c.b16 %v215, %v214
    %v253 = vpack.c.b16 %v217, %v216
    %v254 = vpack.c.b16 %v219, %v218
    %v255 = vpack.c.b16 %v221, %v220
    %v256 = vpack.c.b16 %v223, %v222
    %v257 = vpack.c.b16 %v225, %v224
    %290 = vmatprep.subr.bf16.mxu0 0
    %291 = vmatpush1.bf16.xpose.msra.mxu0 %v226
    %292 = vmatprep.subr.bf16.mxu0 0
    %293 = vmatpush1.bf16.xpose.msra.mxu0 %v227
    %294 = vmatprep.subr.bf16.mxu0 0
    %295 = vmatpush1.bf16.xpose.msra.mxu0 %v228
    %296 = vmatprep.subr.bf16.mxu0 0
    %297 = vmatpush1.bf16.xpose.msra.mxu0 %v229
    %298 = vmatprep.subr.bf16.mxu0 0
    %299 = vmatpush1.bf16.xpose.msra.mxu0 %v230
    %300 = vmatprep.subr.bf16.mxu0 0
    %301 = vmatpush1.bf16.xpose.msra.mxu0 %v231
    %302 = vmatprep.subr.bf16.mxu0 0
    %303 = vmatpush1.bf16.xpose.msra.mxu0 %v232
    %304 = vmatprep.subr.bf16.mxu0 0
    %305 = vmatpush1.bf16.xpose.msra.mxu0 %v233
    %306 = vmatprep.subr.bf16.mxu0 0
    %307 = vmatpush1.bf16.xpose.msra.mxu0 %v234
    %308 = vmatprep.subr.bf16.mxu0 0
    %309 = vmatpush1.bf16.xpose.msra.mxu0 %v235
    %310 = vmatprep.subr.bf16.mxu0 0
    %311 = vmatpush1.bf16.xpose.msra.mxu0 %v236
    %312 = vmatprep.subr.bf16.mxu0 0
    %313 = vmatpush1.bf16.xpose.msra.mxu0 %v237
    %314 = vmatprep.subr.bf16.mxu0 0
    %315 = vmatpush1.bf16.xpose.msra.mxu0 %v238
    %316 = vmatprep.subr.bf16.mxu0 0
    %317 = vmatpush1.bf16.xpose.msra.mxu0 %v239
    %318 = vmatprep.subr.bf16.mxu0 0
    %319 = vmatpush1.bf16.xpose.msra.mxu0 %v240
    %320 = vmatprep.subr.bf16.mxu0 0
    %321 = vmatpush1.bf16.xpose.msra.mxu0 %v241
    %322 = vmatprep.mubr.bf16.mxu0 0
    %323 = vmatmul.mubr.bf16.gmra.mrb[0].mxu0 %v33
    %v324 = vpop.f32.mrb[0].mxu0
    %v325 = vadd.f32 0.0, %v324
    %v326 = vpop.f32.mrb[0].mxu0
    %v327 = vadd.f32 0.0, %v326
    %v328 = vpop.f32.mrb[0].mxu0
    %v329 = vpop.f32.mrb[0].mxu0
    %330 = vdwg.mxu0
    %331 = vmatprep.subr.bf16.mxu0 0
    %332 = vmatpush1.bf16.xpose.msra.mxu0 %v242
    %333 = vmatprep.subr.bf16.mxu0 0
    %334 = vmatpush1.bf16.xpose.msra.mxu0 %v243
    %335 = vmatprep.subr.bf16.mxu0 0
    %336 = vmatpush1.bf16.xpose.msra.mxu0 %v244
    %337 = vmatprep.subr.bf16.mxu0 0
    %338 = vmatpush1.bf16.xpose.msra.mxu0 %v245
    %339 = vmatprep.subr.bf16.mxu0 0
    %340 = vmatpush1.bf16.xpose.msra.mxu0 %v246
    %341 = vmatprep.subr.bf16.mxu0 0
    %342 = vmatpush1.bf16.xpose.msra.mxu0 %v247
    %343 = vmatprep.subr.bf16.mxu0 0
    %344 = vmatpush1.bf16.xpose.msra.mxu0 %v248
    %345 = vmatprep.subr.bf16.mxu0 0
    %346 = vmatpush1.bf16.xpose.msra.mxu0 %v249
    %347 = vmatprep.subr.bf16.mxu0 0
    %348 = vmatpush1.bf16.xpose.msra.mxu0 %v250
    %349 = vmatprep.subr.bf16.mxu0 0
    %350 = vmatpush1.bf16.xpose.msra.mxu0 %v251
    %351 = vmatprep.subr.bf16.mxu0 0
    %352 = vmatpush1.bf16.xpose.msra.mxu0 %v252
    %353 = vmatprep.subr.bf16.mxu0 0
    %354 = vmatpush1.bf16.xpose.msra.mxu0 %v253
    %355 = vmatprep.subr.bf16.mxu0 0
    %356 = vmatpush1.bf16.xpose.msra.mxu0 %v254
    %357 = vmatprep.subr.bf16.mxu0 0
    %358 = vmatpush1.bf16.xpose.msra.mxu0 %v255
    %359 = vmatprep.subr.bf16.mxu0 0
    %360 = vmatpush1.bf16.xpose.msra.mxu0 %v256
    %361 = vmatprep.subr.bf16.mxu0 0
    %362 = vmatpush1.bf16.xpose.msra.mxu0 %v257
    %363 = vmatprep.mubr.bf16.mxu0 0
    %364 = vmatmul.mubr.bf16.gmra.mrb[0].mxu0 %v33
    %v365 = vpop.f32.mrb[0].mxu0
    %v366 = vadd.f32 0.0, %v365
    %v367 = vpop.f32.mrb[0].mxu0
    %v368 = vadd.f32 0.0, %v367
    %v369 = vpop.f32.mrb[0].mxu0
    %v370 = vpop.f32.mrb[0].mxu0
    %371 = vdwg.mxu0
    %v372 = vld [vmem:[%s2] sm:$0xf]
    %v374 = vlaneseq
    %v375 = vshrl.u32 %v374, 7
    %v376 = vsub.s32 0, %v375
    %v377 = vrot.slane %v372, %v376
    %v378 = vlaneseq
    %v379 = vshrl.u32 %v378, 7
    %v380 = vsub.s32 1, %v379
    %v381 = vrot.slane %v372, %v380
    %v382 = vlaneseq
    %v383 = vshrl.u32 %v382, 7
    %v384 = vsub.s32 2, %v383
    %v385 = vrot.slane %v372, %v384
    %v386 = vlaneseq
    %v387 = vshrl.u32 %v386, 7
    %v388 = vsub.s32 3, %v387
    %v389 = vrot.slane %v372, %v388
    %v394 = vmul.f32 %v325, %v377
    %v395 = vmul.f32 %v327, %v381
    %v396 = vmul.f32 %v366, %v385
    %v397 = vmul.f32 %v368, %v389
    %s398 = smul.u32 0, 512
    %v399 = vlaneseq
    %v400 = vand.u32 %v399, 127
    %v401 = vadd.s32 %v400, 128
    %v402 = vadd.s32 %v400, 256
    %v403 = vadd.s32 %v400, 384
    %v404 = vstv %s398
    %v405 = vadd.s32 %v400, %v404
    %v406 = vadd.s32 %v401, %v404
    %v407 = vadd.s32 %v402, %v404
    %v408 = vadd.s32 %v403, %v404
    %v409 = vld [vmem:[%s3] sm:$0xff]
    %410 = vset.pattern.permute.xlu0 0
    %411 = vperm.xlu0 %410, %v409
    %v412 = vpop.permute.xlu0 %411
    %vm413 = vcmp.eq.s32.totalorder %v405, %v412
    %vm414 = vcmp.eq.s32.totalorder %v406, %v412
    %vm415 = vcmp.eq.s32.totalorder %v407, %v412
    %vm416 = vcmp.eq.s32.totalorder %v408, %v412
    %v417 = vsel %vm413, 1, 0
    %v418 = vsel %vm414, 1, 0
    %v419 = vsel %vm415, 1, 0
    %v420 = vsel %vm416, 1, 0
    %v421 = vcvt.s32.f32 %v417
    %v422 = vcvt.s32.f32 %v418
    %v423 = vcvt.s32.f32 %v419
    %v424 = vcvt.s32.f32 %v420
    %v425 = vmul.f32 %v421, 0.4
    %v426 = vmul.f32 %v422, 0.4
    %v427 = vmul.f32 %v423, 0.4
    %v428 = vmul.f32 %v424, 0.4
    %v429 = vsub.f32 %v394, %v425
    %v430 = vsub.f32 %v395, %v426
    %v431 = vsub.f32 %v396, %v427
    %v432 = vsub.f32 %v397, %v428
    %v433 = vmul.f32 %v429, 64.0
    %v434 = vmul.f32 %v430, 64.0
    %v435 = vmul.f32 %v431, 64.0
    %v436 = vmul.f32 %v432, 64.0
    %437 = vst [vmem:[#allocation5] sm:$0xff] %v433
    %438 = vst [vmem:[#allocation5 + $0x8] sm:$0xff] %v434
    %439 = vst [vmem:[#allocation5 + $0x10] sm:$0xff] %v435
    %440 = vst [vmem:[#allocation5 + $0x18] sm:$0xff] %v436
    // Predicated region
    $region22: #{tpu_custom_call.1} parent=1 // pred_check
      _
    $region23: #{tpu_custom_call.1} parent=1 // pred_check_branch
      %442 = sbr.rel (0) target = $region25
    $region24: #{tpu_custom_call.1} parent=1 // pred_region
      %s444 = ssub.s32 512, 512
      %445 = vsyncadd [#allocation4], %s444
      %s447 = sshll.u32 [#allocation5], 4
      %s448 = int_to_ptr.vmem [resolvable:$true] %s447
      %450 = dma.vmem_to_hbm [thread:$0]  %s448, 512, %s4, [#allocation4]
    $region25: #{tpu_custom_call.1} parent=1 // pred_fallthru
      _
    // Predicated region
    $region26: #{tpu_custom_call.1} parent=1 // pred_check
      _
    $region27: #{tpu_custom_call.1} parent=1 // pred_check_branch
      %452 = sbr.rel (0) target = $region29
    $region28: #{tpu_custom_call.1} parent=1 // pred_region
      %453 = dma.done [#allocation4], 512
    $region29: #{tpu_custom_call.1} parent=1 // pred_fallthru
      _
    %454 = vsyncpa [#allocation3], 1
    %455 = vsyncpa [#allocation4], 1

</llo_original>
